<compile_context>
chip_gen: v7x
topology: tpu7x:2x2x1
jax: 0.10.0
libtpu: 0.0.40
codegen_flags: <defaults>
</compile_context>

<pallas_src>
import jax
import jax.numpy as jnp
from jax.experimental import pallas as pl
from jax.experimental.pallas import tpu as pltpu

LANE = 128  # TPU lane width


def _round_up(x, m):
    return ((x + m - 1) // m) * m


def _pick_batch_tile(B, max_tile=4096):
    """Batch tile: multiple of 16 (bf16 sublane packing), capped at max_tile,
    and >= 2 grid steps whenever B > 16 so v7x's two TensorCores both get work."""
    if B <= 16:
        return B  # single full-extent block (block_shape == full dim is always legal)
    n_steps = max(2, pl.cdiv(B, max_tile))
    tb = _round_up(pl.cdiv(B, n_steps), 16)
    return min(tb, max_tile)


def mlp_kernel(x_ref, w1_ref, b1_ref, w2_ref, b2_ref, o_ref):
    # Layer 1 in f32 (K = in_features is tiny, so f32 MXU multi-pass is free and
    # avoids rounding the activations to bf16).  f32 accumulation, f32 bias, ReLU.
    h = jnp.dot(x_ref[...], w1_ref[...], preferred_element_type=jnp.float32)
    h = jnp.maximum(h + b1_ref[...], 0.0)          # b1 is (1, H) -> broadcasts over batch
    # Layer 2 on the bf16 MXU path (K = hidden = 256), f32 accumulation,
    # lane-dense bf16 store (out features padded to a multiple of 128).
    o = jnp.dot(h.astype(w2_ref.dtype), w2_ref[...], preferred_element_type=jnp.float32)
    o_ref[...] = (o + b2_ref[...]).astype(o_ref.dtype)


def mlp_forward(x, w1, b1, w2, b2, *, max_tile=4096, unpad=True):
    B, F = x.shape
    H = w1.shape[1]
    O = w2.shape[1]
    O_pad = _round_up(O, LANE)

    tb = _pick_batch_tile(B, max_tile)
    grid = (pl.cdiv(B, tb),)

    # One-time, tiny weight preprocessing (these stay VMEM-resident across the grid).
    w1_f32 = w1.astype(jnp.float32)
    b1_2d = b1.reshape(1, H).astype(jnp.float32)
    w2_bf = jnp.zeros((H, O_pad), jnp.bfloat16).at[:, :O].set(w2.astype(jnp.bfloat16))
    b2_2d = jnp.zeros((1, O_pad), jnp.float32).at[:, :O].set(
        b2.astype(jnp.float32).reshape(1, O))

    vmem = pltpu.MemorySpace.VMEM

    cost = pl.CostEstimate(
        flops=2 * B * (F * H + H * O_pad),
        transcendentals=0,
        bytes_accessed=(
            B * F * 4                    # x (f32, read once by the kernel)
            + w1_f32.size * 4 + b1_2d.size * 4
            + w2_bf.size * 2 + b2_2d.size * 4
            + B * O_pad * 2              # bf16 lane-dense output
        ),
    )

    out = pl.pallas_call(
        mlp_kernel,
        out_shape=jax.ShapeDtypeStruct((B, O_pad), jnp.bfloat16),
        grid=grid,
        in_specs=[
            pl.BlockSpec((tb, F), lambda i: (i, 0), memory_space=vmem),       # x tile
            pl.BlockSpec((F, H), lambda i: (0, 0), memory_space=vmem),        # w1 (resident)
            pl.BlockSpec((1, H), lambda i: (0, 0), memory_space=vmem),        # b1 (resident)
            pl.BlockSpec((H, O_pad), lambda i: (0, 0), memory_space=vmem),    # w2 (resident)
            pl.BlockSpec((1, O_pad), lambda i: (0, 0), memory_space=vmem),    # b2 (resident)
        ],
        out_specs=pl.BlockSpec((tb, O_pad), lambda i: (i, 0), memory_space=vmem),
        compiler_params=pltpu.CompilerParams(
            dimension_semantics=("parallel",),   # batch axis: shards across TCs on v7x
        ),
        cost_estimate=cost,
    )(x.astype(jnp.float32), w1_f32, b1_2d, w2_bf, b2_2d)

    if not unpad:
        # (B, O_pad) bf16 lane-dense slab: cheapest for fused downstream consumers.
        return out
    return out[:, :O].astype(x.dtype)


if __name__ == "__main__":
    key = jax.random.PRNGKey(0)
    k_x, k_w1, k_b1, k_w2, k_b2 = jax.random.split(key, 5)

    batch, in_features, hidden, out_features = 8, 32, 256, 10

    # Deterministic synthetic parameters (PyTorch-style uniform(-1/sqrt(fan_in), 1/sqrt(fan_in)))
    x = jax.random.normal(k_x, (batch, in_features), dtype=jnp.float32)

    bound1 = 1.0 / jnp.sqrt(in_features)
    w1 = jax.random.uniform(k_w1, (in_features, hidden), jnp.float32, -bound1, bound1)
    b1 = jax.random.uniform(k_b1, (hidden,), jnp.float32, -bound1, bound1)

    bound2 = 1.0 / jnp.sqrt(hidden)
    w2 = jax.random.uniform(k_w2, (hidden, out_features), jnp.float32, -bound2, bound2)
    b2 = jax.random.uniform(k_b2, (out_features,), jnp.float32, -bound2, bound2)

    def ref_fn(xx):
        return jnp.maximum(xx @ w1 + b1, 0.0) @ w2 + b2

    # Small single-step case (grid == (1,), block == full batch).
    out = jax.block_until_ready(mlp_forward(x, w1, b1, w2, b2))
    assert out.shape == (batch, out_features)
    assert jnp.allclose(out, ref_fn(x), atol=3e-2, rtol=3e-2), jnp.max(jnp.abs(out - ref_fn(x)))

    # Multi-step case exercising the >=2-step grid and the partial last block (B=50, tb=32).
    x2 = jax.random.normal(jax.random.PRNGKey(1), (50, in_features), dtype=jnp.float32)
    out2 = jax.block_until_ready(mlp_forward(x2, w1, b1, w2, b2))
    assert out2.shape == (50, out_features)
    assert jnp.allclose(out2, ref_fn(x2), atol=3e-2, rtol=3e-2), jnp.max(jnp.abs(out2 - ref_fn(x2)))

    print("KERNEL_OK")
</pallas_src>

<mosaic_0001>
module attributes {stable_mosaic.version = 11 : i64} {
  func.func @mlp_kernel(%arg0: i32, %arg1: memref<8x32xf32, #tpu.memory_space<vmem>>, %arg2: memref<32x256xf32, #tpu.memory_space<vmem>>, %arg3: memref<1x256xf32, #tpu.memory_space<vmem>>, %arg4: memref<256x128xbf16, #tpu.memory_space<vmem>>, %arg5: memref<1x128xf32, #tpu.memory_space<vmem>>, %arg6: memref<8x128xbf16, #tpu.memory_space<vmem>>) attributes {dimension_semantics = [#tpu.dimension_semantics<parallel>], iteration_bounds = array<i64: 1>, scalar_prefetch = 0 : i64, scratch_operands = 0 : i64, tpu.core_type = #tpu.core_type<tc>, window_params = [{transform_indices = @transform_0, window_bounds = array<i64: 8, 32>}, {pipeline_mode = #tpu.pipeline_mode<synchronous>, transform_indices = @transform_1, window_bounds = array<i64: 32, 256>}, {pipeline_mode = #tpu.pipeline_mode<synchronous>, transform_indices = @transform_2, window_bounds = array<i64: 1, 256>}, {pipeline_mode = #tpu.pipeline_mode<synchronous>, transform_indices = @transform_3, window_bounds = array<i64: 256, 128>}, {pipeline_mode = #tpu.pipeline_mode<synchronous>, transform_indices = @transform_4, window_bounds = array<i64: 1, 128>}, {transform_indices = @transform_5, window_bounds = array<i64: 8, 128>}]} {
    %c0 = arith.constant 0 : index
    %c0_0 = arith.constant 0 : index
    %0 = vector.load %arg1[%c0, %c0_0] : memref<8x32xf32, #tpu.memory_space<vmem>>, vector<8x32xf32>
    %c0_1 = arith.constant 0 : index
    %c0_2 = arith.constant 0 : index
    %1 = vector.load %arg2[%c0_1, %c0_2] : memref<32x256xf32, #tpu.memory_space<vmem>>, vector<32x256xf32>
    %cst = arith.constant dense<0.000000e+00> : vector<8x256xf32>
    %2 = tpu.matmul %0, %1, %cst {dimension_numbers = #tpu.dot_dimension_numbers<[1], [0], [0], [1], [0, 0, 1, 1], [], []>} : vector<8x32xf32>, vector<32x256xf32>, vector<8x256xf32> -> vector<8x256xf32>
    %c0_3 = arith.constant 0 : index
    %c0_4 = arith.constant 0 : index
    %3 = vector.load %arg3[%c0_3, %c0_4] : memref<1x256xf32, #tpu.memory_space<vmem>>, vector<1x256xf32>
    %4 = vector.broadcast %3 : vector<1x256xf32> to vector<8x256xf32>
    %5 = arith.addf %2, %4 : vector<8x256xf32>
    %cst_5 = arith.constant 0.000000e+00 : f32
    %6 = vector.broadcast %cst_5 : f32 to vector<8x256xf32>
    %7 = arith.maximumf %5, %6 : vector<8x256xf32>
    %8 = arith.truncf %7 : vector<8x256xf32> to vector<8x256xbf16>
    %c0_6 = arith.constant 0 : index
    %c0_7 = arith.constant 0 : index
    %9 = vector.load %arg4[%c0_6, %c0_7] : memref<256x128xbf16, #tpu.memory_space<vmem>>, vector<256x128xbf16>
    %cst_8 = arith.constant dense<0.000000e+00> : vector<8x128xf32>
    %10 = tpu.matmul %8, %9, %cst_8 {dimension_numbers = #tpu.dot_dimension_numbers<[1], [0], [0], [1], [0, 0, 1, 1], [], []>} : vector<8x256xbf16>, vector<256x128xbf16>, vector<8x128xf32> -> vector<8x128xf32>
    %c0_9 = arith.constant 0 : index
    %c0_10 = arith.constant 0 : index
    %11 = vector.load %arg5[%c0_9, %c0_10] : memref<1x128xf32, #tpu.memory_space<vmem>>, vector<1x128xf32>
    %12 = vector.broadcast %11 : vector<1x128xf32> to vector<8x128xf32>
    %13 = arith.addf %10, %12 : vector<8x128xf32>
    %14 = arith.truncf %13 : vector<8x128xf32> to vector<8x128xbf16>
    %c0_11 = arith.constant 0 : index
    %c0_12 = arith.constant 0 : index
    %15 = vector.load %arg6[%c0_11, %c0_12] : memref<8x128xbf16, #tpu.memory_space<vmem>>, vector<8x128xbf16>
    tpu.vector_store %arg6[%c0_11, %c0_12], %14 {strides = array<i32>} : memref<8x128xbf16, #tpu.memory_space<vmem>>, vector<8x128xbf16>,
    return
  }
  func.func @transform_0(%arg0: i32) -> (i32, i32) {
    %c0_i32 = arith.constant 0 : i32
    %c0_i32_0 = arith.constant 0 : i32
    return %arg0, %c0_i32 : i32, i32
  }
  func.func @transform_1(%arg0: i32) -> (i32, i32) {
    %c0_i32 = arith.constant 0 : i32
    %c0_i32_0 = arith.constant 0 : i32
    %c0_i32_1 = arith.constant 0 : i32
    return %c0_i32, %c0_i32_0 : i32, i32
  }
  func.func @transform_2(%arg0: i32) -> (i32, i32) {
    %c0_i32 = arith.constant 0 : i32
    %c0_i32_0 = arith.constant 0 : i32
    %c0_i32_1 = arith.constant 0 : i32
    return %c0_i32, %c0_i32_0 : i32, i32
  }
  func.func @transform_3(%arg0: i32) -> (i32, i32) {
    %c0_i32 = arith.constant 0 : i32
    %c0_i32_0 = arith.constant 0 : i32
    %c0_i32_1 = arith.constant 0 : i32
    return %c0_i32, %c0_i32_0 : i32, i32
  }
  func.func @transform_4(%arg0: i32) -> (i32, i32) {
    %c0_i32 = arith.constant 0 : i32
    %c0_i32_0 = arith.constant 0 : i32
    %c0_i32_1 = arith.constant 0 : i32
    return %c0_i32, %c0_i32_0 : i32, i32
  }
  func.func @transform_5(%arg0: i32) -> (i32, i32) {
    %c0_i32 = arith.constant 0 : i32
    %c0_i32_0 = arith.constant 0 : i32
    return %arg0, %c0_i32 : i32, i32
  }
}

</mosaic_0001>

<llo_original>
// kernel: tpu_custom_call.1
$region0: #{tpu_custom_call.1}
  #allocation0 [shape = 'u32[]', space=smem, size = 0x4, offset = 0x4, fixed_abs, tag = 'smem constant byte address 0x4 - core index']
  #allocation1 [shape = 'u32[144,128]{1,0:T(1,128)}', space=vmem, size = 0x12000, scoped, tag = 'internal scratch']
  %s0 = inlined_call_operand.hbm [shape: f32[8,32], index: 0, kind: input, shape index: {}]
  %s1 = inlined_call_operand.hbm [shape: f32[32,256], index: 1, kind: input, shape index: {}]
  %s2 = inlined_call_operand.vmem [shape: f32[1,256], index: 2, kind: input, shape index: {}]
  %s3 = inlined_call_operand.hbm [shape: bf16[256,128], index: 3, kind: input, shape index: {}]
  %s4 = inlined_call_operand.vmem [shape: f32[1,128], index: 4, kind: input, shape index: {}]
  %s5 = inlined_call_operand.hbm [shape: bf16[8,128], index: 5, kind: output, shape index: {}]
  %s6 = sld [smem:[#allocation0]]
  $region42: #{tpu_custom_call.1} parent=0
    _
  %s8 = ssub.s32 1, %s6
  %s9 = scalar_select 0, %s8, %s6
  $region1: #{tpu_custom_call.1} parent=0
    #allocation2 [shape = 'u8[4096]{0}', space=vmem, size = 0x1000, scoped, tag = 'input window, operand 0, single buffered']
    #allocation3 [shape = 's32[1]{0}', space=sflag, size = 0x4, scoped, tag = 'scoped memory for tpu_custom_call.1']
    #allocation4 [shape = 's32[1]{0}', space=sflag, size = 0x4, scoped, tag = 'scoped memory for tpu_custom_call.1']
    #allocation5 [shape = 'u8[32768]{0}', space=vmem, size = 0x8000, scoped, tag = 'input window, operand 1, single buffered']
    #allocation6 [shape = 's32[1]{0}', space=sflag, size = 0x4, scoped, tag = 'scoped memory for tpu_custom_call.1']
    #allocation7 [shape = 'u8[65536]{0}', space=vmem, size = 0x10000, scoped, tag = 'input window, operand 3, single buffered']
    #allocation8 [shape = 'u8[2048]{0}', space=vmem, size = 0x800, scoped, tag = 'output window, operand 0, single buffered']
    %10 = vsyncpa [#allocation3], 0
    %11 = vsyncpa [#allocation6], 0
    %12 = vsyncpa [#allocation4], 0
    // Predicated region
    $region2: #{tpu_custom_call.1} parent=1 // pred_check
      _
    $region3: #{tpu_custom_call.1} parent=1 // pred_check_branch
      %14 = sbr.rel (0) target = $region5
    $region4: #{tpu_custom_call.1} parent=1 // pred_region
      %s16 = ssub.s32 128, 128
      %17 = vsyncadd [#allocation3], %s16
      %s19 = sshll.u32 [#allocation2], 4
      %s20 = int_to_ptr.vmem [resolvable:$true] %s19
      %22 = dma.hbm_to_vmem [thread:$0]  %s0, 128, %s20, [#allocation3]
    $region5: #{tpu_custom_call.1} parent=1 // pred_fallthru
      _
    // Predicated region
    $region6: #{tpu_custom_call.1} parent=1 // pred_check
      _
    $region7: #{tpu_custom_call.1} parent=1 // pred_check_branch
      %24 = sbr.rel (0) target = $region9
    $region8: #{tpu_custom_call.1} parent=1 // pred_region
      %s26 = ssub.s32 1024, 1024
      %27 = vsyncadd [#allocation6], %s26
      %s28 = sshll.u32 [#allocation5], 4
      %s29 = int_to_ptr.vmem [resolvable:$true] %s28
      %34 = dma.hbm_to_vmem [thread:$0]  %s1, 1024, %s29, [#allocation6], 256, 256, 16
    $region9: #{tpu_custom_call.1} parent=1 // pred_fallthru
      _
    // Predicated region
    $region10: #{tpu_custom_call.1} parent=1 // pred_check
      _
    $region11: #{tpu_custom_call.1} parent=1 // pred_check_branch
      %36 = sbr.rel (0) target = $region13
    $region12: #{tpu_custom_call.1} parent=1 // pred_region
      _
    $region13: #{tpu_custom_call.1} parent=1 // pred_fallthru
      _
    // Predicated region
    $region14: #{tpu_custom_call.1} parent=1 // pred_check
      _
    $region15: #{tpu_custom_call.1} parent=1 // pred_check_branch
      %38 = sbr.rel (0) target = $region17
    $region16: #{tpu_custom_call.1} parent=1 // pred_region
      %s40 = ssub.s32 2048, 2048
      %41 = vsyncadd [#allocation6], %s40
      %s42 = sshll.u32 [#allocation7], 4
      %s43 = int_to_ptr.vmem [resolvable:$true] %s42
      %48 = dma.hbm_to_vmem [thread:$0]  %s3, 2048, %s43, [#allocation6], 64, 64, 4
    $region17: #{tpu_custom_call.1} parent=1 // pred_fallthru
      _
    // Predicated region
    $region18: #{tpu_custom_call.1} parent=1 // pred_check
      _
    $region19: #{tpu_custom_call.1} parent=1 // pred_check_branch
      %50 = sbr.rel (0) target = $region21
    $region20: #{tpu_custom_call.1} parent=1 // pred_region
      _
    $region21: #{tpu_custom_call.1} parent=1 // pred_fallthru
      _
    // Predicated region
    $region22: #{tpu_custom_call.1} parent=1 // pred_check
      _
    $region23: #{tpu_custom_call.1} parent=1 // pred_check_branch
      %52 = sbr.rel (0) target = $region25
    $region24: #{tpu_custom_call.1} parent=1 // pred_region
      %53 = dma.done [#allocation3], 128
    $region25: #{tpu_custom_call.1} parent=1 // pred_fallthru
      _
    // Predicated region
    $region26: #{tpu_custom_call.1} parent=1 // pred_check
      _
    $region27: #{tpu_custom_call.1} parent=1 // pred_check_branch
      %55 = sbr.rel (0) target = $region29
    $region28: #{tpu_custom_call.1} parent=1 // pred_region
      %56 = dma.done [#allocation6], 1024
    $region29: #{tpu_custom_call.1} parent=1 // pred_fallthru
      _
    // Predicated region
    $region30: #{tpu_custom_call.1} parent=1 // pred_check
      _
    $region31: #{tpu_custom_call.1} parent=1 // pred_check_branch
      %58 = sbr.rel (0) target = $region33
    $region32: #{tpu_custom_call.1} parent=1 // pred_region
      %59 = dma.done [#allocation6], 2048
    $region33: #{tpu_custom_call.1} parent=1 // pred_fallthru
      _
    %v61 = vld [vmem:[#allocation2] sm:$0xff]
    %v62 = vld [vmem:[#allocation5] sm:$0xff]
    %v63 = vld [vmem:[#allocation5 + $0x8] sm:$0xff]
    %v64 = vld [vmem:[#allocation5 + $0x10] sm:$0xff]
    %v65 = vld [vmem:[#allocation5 + $0x18] sm:$0xff]
    %v66 = vld [vmem:[#allocation5 + $0x20] sm:$0xff]
    %v67 = vld [vmem:[#allocation5 + $0x28] sm:$0xff]
    %v68 = vld [vmem:[#allocation5 + $0x30] sm:$0xff]
    %v69 = vld [vmem:[#allocation5 + $0x38] sm:$0xff]
    %v70 = vld [vmem:[%s2] sm:$0x3]
    %v72 = vlaneseq
    %v73 = vshrl.u32 %v72, 7
    %v74 = vsub.s32 0, %v73
    %v75 = vrot.slane %v70, %v74
    %v76 = vlaneseq
    %v77 = vshrl.u32 %v76, 7
    %v78 = vsub.s32 1, %v77
    %v79 = vrot.slane %v70, %v78
    %vm82 = vcmask 261120
    %v84 = vsel %vm82, %v61, 0
    %86 = vmatprep.subr.mxu0 %v63
    %87 = vmatpush1.msra.mxu0 %v62
    %88 = vmatprep.subr.mxu0 %v65
    %89 = vmatpush1.msra.mxu0 %v64
    %90 = vmatprep.subr.mxu0 %v67
    %91 = vmatpush1.msra.mxu0 %v66
    %92 = vmatprep.subr.mxu0 %v69
    %93 = vmatpush1.msra.mxu0 %v68
    %94 = vmatprep.subr.mxu0 0.0
    %95 = vmatpush1.msra.mxu0 0.0
    %96 = vmatprep.subr.mxu0 0.0
    %97 = vmatpush1.msra.mxu0 0.0
    %98 = vmatprep.subr.mxu0 0.0
    %99 = vmatpush1.msra.mxu0 0.0
    %100 = vmatprep.subr.mxu0 0.0
    %101 = vmatpush1.msra.mxu0 0.0
    %102 = vmatprep.subr.mxu0 0.0
    %103 = vmatpush1.msra.mxu0 0.0
    %104 = vmatprep.subr.mxu0 0.0
    %105 = vmatpush1.msra.mxu0 0.0
    %106 = vmatprep.subr.mxu0 0.0
    %107 = vmatpush1.msra.mxu0 0.0
    %108 = vmatprep.subr.mxu0 0.0
    %109 = vmatpush1.msra.mxu0 0.0
    %110 = vmatprep.subr.mxu0 0.0
    %111 = vmatpush1.msra.mxu0 0.0
    %112 = vmatprep.subr.mxu0 0.0
    %113 = vmatpush1.msra.mxu0 0.0
    %114 = vmatprep.subr.mxu0 0.0
    %115 = vmatpush1.msra.mxu0 0.0
    %116 = vmatprep.subr.mxu0 0.0
    %117 = vmatpush1.msra.mxu0 0.0
    %118 = vmatprep.subr.mxu0 0.0
    %119 = vmatpush1.msra.mxu0 0.0
    %120 = vmatprep.subr.mxu0 0.0
    %121 = vmatpush1.msra.mxu0 0.0
    %122 = vmatprep.subr.mxu0 0.0
    %123 = vmatpush1.msra.mxu0 0.0
    %124 = vmatprep.subr.mxu0 0.0
    %125 = vmatpush1.msra.mxu0 0.0
    %126 = vmatprep.subr.mxu0 0.0
    %127 = vmatpush1.msra.mxu0 0.0
    %128 = vmatprep.subr.mxu0 0.0
    %129 = vmatpush1.msra.mxu0 0.0
    %130 = vmatprep.subr.mxu0 0.0
    %131 = vmatpush1.msra.mxu0 0.0
    %132 = vmatprep.subr.mxu0 0.0
    %133 = vmatpush1.msra.mxu0 0.0
    %134 = vmatprep.subr.mxu0 0.0
    %135 = vmatpush1.msra.mxu0 0.0
    %136 = vmatprep.subr.mxu0 0.0
    %137 = vmatpush1.msra.mxu0 0.0
    %138 = vmatprep.subr.mxu0 0.0
    %139 = vmatpush1.msra.mxu0 0.0
    %140 = vmatprep.subr.mxu0 0.0
    %141 = vmatpush1.msra.mxu0 0.0
    %142 = vmatprep.subr.mxu0 0.0
    %143 = vmatpush1.msra.mxu0 0.0
    %144 = vmatprep.subr.mxu0 0.0
    %145 = vmatpush1.msra.mxu0 0.0
    %146 = vmatprep.subr.mxu0 0.0
    %147 = vmatpush1.msra.mxu0 0.0
    %148 = vmatprep.subr.mxu0 0.0
    %149 = vmatpush1.msra.mxu0 0.0
    %150 = vmatprep.mubr.f32.mxu0 0.0
    %151 = vmatmul.mubr.f32.gmra.mrb[0].mxu0 %v84
    %v152 = vpop.f32.mrb[0].mxu0
    %v153 = vadd.f32 %v75, %v152
    %v154 = vpop.f32.mrb[0].mxu0
    %v155 = vadd.f32 %v79, %v154
    %156 = vdwg.mxu0
    %v157 = vmax.f32 %v153, 0.0
    %v158 = vmax.f32 %v155, 0.0
    %v159 = vpack.c.bf16 %v157, %v157
    %v160 = vpack.c.bf16 %v158, %v158
    %v161 = vld [vmem:[#allocation7] sm:$0xf]
    %v162 = vld [vmem:[#allocation7 + $0x4] sm:$0xf]
    %v163 = vld [vmem:[#allocation7 + $0x8] sm:$0xf]
    %v164 = vld [vmem:[#allocation7 + $0xc] sm:$0xf]
    %v165 = vld [vmem:[#allocation7 + $0x10] sm:$0xf]
    %v166 = vld [vmem:[#allocation7 + $0x14] sm:$0xf]
    %v167 = vld [vmem:[#allocation7 + $0x18] sm:$0xf]
    %v168 = vld [vmem:[#allocation7 + $0x1c] sm:$0xf]
    %v169 = vld [vmem:[#allocation7 + $0x20] sm:$0xf]
    %v170 = vld [vmem:[#allocation7 + $0x24] sm:$0xf]
    %v171 = vld [vmem:[#allocation7 + $0x28] sm:$0xf]
    %v172 = vld [vmem:[#allocation7 + $0x2c] sm:$0xf]
    %v173 = vld [vmem:[#allocation7 + $0x30] sm:$0xf]
    %v174 = vld [vmem:[#allocation7 + $0x34] sm:$0xf]
    %v175 = vld [vmem:[#allocation7 + $0x38] sm:$0xf]
    %v176 = vld [vmem:[#allocation7 + $0x3c] sm:$0xf]
    %v177 = vld [vmem:[#allocation7 + $0x40] sm:$0xf]
    %v178 = vld [vmem:[#allocation7 + $0x44] sm:$0xf]
    %v179 = vld [vmem:[#allocation7 + $0x48] sm:$0xf]
    %v180 = vld [vmem:[#allocation7 + $0x4c] sm:$0xf]
    %v181 = vld [vmem:[#allocation7 + $0x50] sm:$0xf]
    %v182 = vld [vmem:[#allocation7 + $0x54] sm:$0xf]
    %v183 = vld [vmem:[#allocation7 + $0x58] sm:$0xf]
    %v184 = vld [vmem:[#allocation7 + $0x5c] sm:$0xf]
    %v185 = vld [vmem:[#allocation7 + $0x60] sm:$0xf]
    %v186 = vld [vmem:[#allocation7 + $0x64] sm:$0xf]
    %v187 = vld [vmem:[#allocation7 + $0x68] sm:$0xf]
    %v188 = vld [vmem:[#allocation7 + $0x6c] sm:$0xf]
    %v189 = vld [vmem:[#allocation7 + $0x70] sm:$0xf]
    %v190 = vld [vmem:[#allocation7 + $0x74] sm:$0xf]
    %v191 = vld [vmem:[#allocation7 + $0x78] sm:$0xf]
    %v192 = vld [vmem:[#allocation7 + $0x7c] sm:$0xf]
    %v193 = vld [vmem:[%s4] sm:$0x1]
    %v195 = vlaneseq
    %v196 = vshrl.u32 %v195, 7
    %v197 = vsub.s32 0, %v196
    %v198 = vrot.slane %v193, %v197
    %v232 = vunpack.c.l.b16 %v161
    %v233 = vunpack.c.l.b16 %v162
    %v234 = vunpack.c.l.b16 %v163
    %v235 = vunpack.c.l.b16 %v164
    %v236 = vunpack.c.l.b16 %v165
    %v237 = vunpack.c.l.b16 %v166
    %v238 = vunpack.c.l.b16 %v167
    %v239 = vunpack.c.l.b16 %v168
    %v240 = vunpack.c.l.b16 %v169
    %v241 = vunpack.c.l.b16 %v170
    %v242 = vunpack.c.l.b16 %v171
    %v243 = vunpack.c.l.b16 %v172
    %v244 = vunpack.c.l.b16 %v173
    %v245 = vunpack.c.l.b16 %v174
    %v246 = vunpack.c.l.b16 %v175
    %v247 = vunpack.c.l.b16 %v176
    %v248 = vunpack.c.l.b16 %v177
    %v249 = vunpack.c.l.b16 %v178
    %v250 = vunpack.c.l.b16 %v179
    %v251 = vunpack.c.l.b16 %v180
    %v252 = vunpack.c.l.b16 %v181
    %v253 = vunpack.c.l.b16 %v182
    %v254 = vunpack.c.l.b16 %v183
    %v255 = vunpack.c.l.b16 %v184
    %v256 = vunpack.c.l.b16 %v185
    %v257 = vunpack.c.l.b16 %v186
    %v258 = vunpack.c.l.b16 %v187
    %v259 = vunpack.c.l.b16 %v188
    %v260 = vunpack.c.l.b16 %v189
    %v261 = vunpack.c.l.b16 %v190
    %v262 = vunpack.c.l.b16 %v191
    %v263 = vunpack.c.l.b16 %v192
    %v264 = vpack.c.b16 %v233, %v232
    %v265 = vpack.c.b16 %v235, %v234
    %v266 = vpack.c.b16 %v237, %v236
    %v267 = vpack.c.b16 %v239, %v238
    %v268 = vpack.c.b16 %v241, %v240
    %v269 = vpack.c.b16 %v243, %v242
    %v270 = vpack.c.b16 %v245, %v244
    %v271 = vpack.c.b16 %v247, %v246
    %v272 = vpack.c.b16 %v249, %v248
    %v273 = vpack.c.b16 %v251, %v250
    %v274 = vpack.c.b16 %v253, %v252
    %v275 = vpack.c.b16 %v255, %v254
    %v276 = vpack.c.b16 %v257, %v256
    %v277 = vpack.c.b16 %v259, %v258
    %v278 = vpack.c.b16 %v261, %v260
    %v279 = vpack.c.b16 %v263, %v262
    %296 = vmatprep.subr.bf16.mxu0 0
    %297 = vmatpush1.bf16.msra.mxu0 %v264
    %298 = vmatprep.subr.bf16.mxu0 0
    %299 = vmatpush1.bf16.msra.mxu0 %v265
    %300 = vmatprep.subr.bf16.mxu0 0
    %301 = vmatpush1.bf16.msra.mxu0 %v266
    %302 = vmatprep.subr.bf16.mxu0 0
    %303 = vmatpush1.bf16.msra.mxu0 %v267
    %304 = vmatprep.subr.bf16.mxu0 0
    %305 = vmatpush1.bf16.msra.mxu0 %v268
    %306 = vmatprep.subr.bf16.mxu0 0
    %307 = vmatpush1.bf16.msra.mxu0 %v269
    %308 = vmatprep.subr.bf16.mxu0 0
    %309 = vmatpush1.bf16.msra.mxu0 %v270
    %310 = vmatprep.subr.bf16.mxu0 0
    %311 = vmatpush1.bf16.msra.mxu0 %v271
    %312 = vmatprep.subr.bf16.mxu0 0
    %313 = vmatpush1.bf16.msra.mxu0 %v272
    %314 = vmatprep.subr.bf16.mxu0 0
    %315 = vmatpush1.bf16.msra.mxu0 %v273
    %316 = vmatprep.subr.bf16.mxu0 0
    %317 = vmatpush1.bf16.msra.mxu0 %v274
    %318 = vmatprep.subr.bf16.mxu0 0
    %319 = vmatpush1.bf16.msra.mxu0 %v275
    %320 = vmatprep.subr.bf16.mxu0 0
    %321 = vmatpush1.bf16.msra.mxu0 %v276
    %322 = vmatprep.subr.bf16.mxu0 0
    %323 = vmatpush1.bf16.msra.mxu0 %v277
    %324 = vmatprep.subr.bf16.mxu0 0
    %325 = vmatpush1.bf16.msra.mxu0 %v278
    %326 = vmatprep.subr.bf16.mxu0 0
    %327 = vmatpush1.bf16.msra.mxu0 %v279
    %328 = vmatprep.mubr.bf16.mxu0 %v160
    %329 = vmatmul.mubr.bf16.gmra.mrb[0].mxu0 %v159
    %v330 = vpop.f32.mrb[0].mxu0
    %v331 = vadd.f32 %v198, %v330
    %v332 = vpop.f32.mrb[0].mxu0
    %v333 = vpop.f32.mrb[0].mxu0
    %v334 = vpop.f32.mrb[0].mxu0
    %335 = vdwg.mxu0
    %v336 = vpack.c.bf16 %v331, %v331
    %337 = vst [vmem:[#allocation8] sm:$0xf] %v336
    // Predicated region
    $region34: #{tpu_custom_call.1} parent=1 // pred_check
      _
    $region35: #{tpu_custom_call.1} parent=1 // pred_check_branch
      %339 = sbr.rel (0) target = $region37
    $region36: #{tpu_custom_call.1} parent=1 // pred_region
      %s341 = ssub.s32 64, 64
      %342 = vsyncadd [#allocation4], %s341
      %s344 = sshll.u32 [#allocation8], 4
      %s345 = int_to_ptr.vmem [resolvable:$true] %s344
      %347 = dma.vmem_to_hbm [thread:$0]  %s345, 64, %s5, [#allocation4]
    $region37: #{tpu_custom_call.1} parent=1 // pred_fallthru
      _
    // Predicated region
    $region38: #{tpu_custom_call.1} parent=1 // pred_check
      _
    $region39: #{tpu_custom_call.1} parent=1 // pred_check_branch
      %349 = sbr.rel (0) target = $region41
    $region40: #{tpu_custom_call.1} parent=1 // pred_region
      %350 = dma.done [#allocation4], 64
    $region41: #{tpu_custom_call.1} parent=1 // pred_fallthru
      _
    %351 = vsyncpa [#allocation3], 1
    %352 = vsyncpa [#allocation6], 1
    %353 = vsyncpa [#allocation4], 1

</llo_original>
